<compile_context>
chip_gen: v7x
topology: tpu7x:2x2x1
jax: 0.10.0
libtpu: 0.0.40
codegen_flags: <defaults>
</compile_context>

<pallas_src>
from functools import partial

import jax
import jax.numpy as jnp
from jax.experimental import pallas as pl
from jax.experimental.pallas import tpu as pltpu


def _round_up(v, m):
    return ((v + m - 1) // m) * m


# ----------------------------------------------------------------------------
# Kernels
# ----------------------------------------------------------------------------
def _linear_bias_kernel_noacc(x_ref, w_ref, b_ref, o_ref, *, compute_dtype):
    """Single-K-step variant: no scratch, no init/finalize branches."""
    x = x_ref[...]
    if compute_dtype is not None:
        x = x.astype(compute_dtype)          # in-vreg cast, no extra HBM pass
    acc = jnp.dot(x, w_ref[...], preferred_element_type=jnp.float32)
    o_ref[...] = (acc + b_ref[...].astype(jnp.float32)).astype(o_ref.dtype)


def _linear_bias_kernel_acc(x_ref, w_ref, b_ref, o_ref, acc_ref, *, compute_dtype):
    """Fallback for large K: f32 accumulator over the last ('arbitrary') axis."""
    k = pl.program_id(2)

    @pl.when(k == 0)
    def _init():
        acc_ref[...] = jnp.zeros_like(acc_ref)

    x = x_ref[...]
    if compute_dtype is not None:
        x = x.astype(compute_dtype)
    acc_ref[...] += jnp.dot(x, w_ref[...], preferred_element_type=jnp.float32)

    @pl.when(k == pl.num_programs(2) - 1)
    def _finalize():
        o_ref[...] = (acc_ref[...] + b_ref[...].astype(jnp.float32)).astype(o_ref.dtype)


# ----------------------------------------------------------------------------
# Tile selection helpers
# ----------------------------------------------------------------------------
def _pick_tm(M, tm_cap):
    """Pick (tm, Mp) with Mp % tm == 0, preferring Mp == M (no pad / no slice)."""
    tm_cap = max(8, tm_cap)
    if M <= tm_cap:
        # split into two tiles when M is large enough so both v7x TCs get work
        if M >= 256 and M % 16 == 0:
            return M // 2, M
        return M, M                      # full-extent block (legal even if M % 8 != 0)
    if M % 8 == 0:
        t = (tm_cap // 8) * 8
        while t >= 8 and M % t:
            t -= 8
        if t >= 8:
            return t, M
    # rare fallback: M > tm_cap and no clean divisor -> pad M
    t = max(8, (tm_cap // 8) * 8)
    return t, _round_up(M, t)


# ----------------------------------------------------------------------------
# Wrapper: tiled, bias-fused linear (y = x @ w + b)
# ----------------------------------------------------------------------------
def pallas_linear(x, w, b, *, out_dtype=None, compute_dtype=None,
                  tm_max=1024, tn_max=2048, tk_max=512,
                  k_resident_max=2048, vmem_budget=12 * 1024 * 1024):
    M, K = x.shape
    Kw, N = w.shape
    assert K == Kw and b.shape == (N,)

    if out_dtype is None:
        out_dtype = x.dtype
    tm_max = max(tm_max, 8)
    tn_max = max(tn_max, 128)
    tk_max = max(tk_max, 128)

    # W is tiny (K x E); cast it once in the wrapper.  x is cast in-kernel.
    if compute_dtype is not None:
        w = w.astype(compute_dtype)

    x_sz = jnp.dtype(x.dtype).itemsize
    w_sz = jnp.dtype(w.dtype).itemsize
    o_sz = jnp.dtype(out_dtype).itemsize

    Np = _round_up(N, 128)               # lane-dense output / weight columns
    k_resident = K <= k_resident_max

    if k_resident:
        Kp, tk = K, K                    # full-extent K block: no padding, 1 step
    else:
        Kp = _round_up(K, 128)
        tk = min(tk_max, Kp)
        tk -= tk % 128
        while Kp % tk:
            tk -= 128

    def step_bytes(tm, tn):
        acc = 0 if k_resident else tm * tn * 4
        return (2 * tm * tk * x_sz          # double-buffered x tile
                + 2 * tk * tn * w_sz        # weight tile
                + 2 * tm * tn * o_sz        # output tile
                + 2 * tn * 4                # bias
                + acc)

    # --- tn: prefer the whole (padded) embed dim resident ---
    if step_bytes(8, Np) <= vmem_budget:
        tn = Np
    else:
        tn = min(tn_max, Np)
        tn -= tn % 128
        while tn > 128 and (Np % tn or step_bytes(8, tn) > vmem_budget):
            tn -= 128

    # --- tm: as large as the VMEM budget allows, dividing M if possible ---
    denom = 2 * tk * x_sz + 2 * tn * o_sz + (0 if k_resident else tn * 4)
    avail = vmem_budget - 2 * tk * tn * w_sz - 2 * tn * 4
    tm_cap = max(8, min(tm_max, (max(avail, 0) // max(denom, 1)) // 8 * 8))
    tm, Mp = _pick_tm(M, tm_cap)

    # --- padding (common case: none of these fire) ---
    if Mp != M or Kp != K:
        x = jnp.pad(x, ((0, Mp - M), (0, Kp - K)))
    if Kp != K or Np != N:
        w = jnp.pad(w, ((0, Kp - K), (0, Np - N)))
    b2 = b.reshape(1, N)
    if Np != N:
        b2 = jnp.pad(b2, ((0, 0), (0, Np - N)))

    if k_resident:
        grid = (Mp // tm, Np // tn)
        out = pl.pallas_call(
            partial(_linear_bias_kernel_noacc, compute_dtype=compute_dtype),
            out_shape=jax.ShapeDtypeStruct((Mp, Np), out_dtype),
            grid_spec=pltpu.PrefetchScalarGridSpec(
                num_scalar_prefetch=0,
                grid=grid,
                in_specs=[
                    pl.BlockSpec((tm, Kp), lambda i, j: (i, 0)),
                    pl.BlockSpec((Kp, tn), lambda i, j: (0, j)),
                    pl.BlockSpec((1, tn), lambda i, j: (0, j)),
                ],
                out_specs=pl.BlockSpec((tm, tn), lambda i, j: (i, j)),
            ),
            compiler_params=pltpu.CompilerParams(
                dimension_semantics=("parallel", "parallel"),
            ),
        )(x, w, b2)
    else:
        grid = (Mp // tm, Np // tn, Kp // tk)
        out = pl.pallas_call(
            partial(_linear_bias_kernel_acc, compute_dtype=compute_dtype),
            out_shape=jax.ShapeDtypeStruct((Mp, Np), out_dtype),
            grid_spec=pltpu.PrefetchScalarGridSpec(
                num_scalar_prefetch=0,
                grid=grid,
                in_specs=[
                    pl.BlockSpec((tm, tk), lambda i, j, k: (i, k)),
                    pl.BlockSpec((tk, tn), lambda i, j, k: (k, j)),
                    pl.BlockSpec((1, tn), lambda i, j, k: (0, j)),
                ],
                out_specs=pl.BlockSpec((tm, tn), lambda i, j, k: (i, j)),
                scratch_shapes=[pltpu.VMEM((tm, tn), jnp.float32)],
            ),
            compiler_params=pltpu.CompilerParams(
                dimension_semantics=("parallel", "parallel", "arbitrary"),
            ),
        )(x, w, b2)

    if Mp != M or Np != N:
        out = out[:M, :N]
    return out


# ----------------------------------------------------------------------------
# OutEmbed forward
# ----------------------------------------------------------------------------
def out_embed_forward(x, conv_weight, conv_bias, patch_length, *,
                      compute_dtype=None, out_dtype=None):
    """OutEmbed.forward.

    x           : (n_samples, out_shape[0], out_shape[1])  -- the module
                  unsqueezes a channel dim of 1 before its Conv2d.
    conv_weight : (embed_dim, 1, patch_length, out_shape[1])  Conv2d weight.
    conv_bias   : (embed_dim,)
    returns     : (n_samples, n_patches, embed_dim)

    compute_dtype=jnp.bfloat16 runs the MXU in bf16 (f32 accumulation kept);
    out_dtype=jnp.bfloat16 halves the dominant (M, E) output write when the
    downstream consumer is bf16.  Defaults keep PyTorch float32 numerics.
    """
    N, Q, V = x.shape
    E = conv_weight.shape[0]
    n_patches = Q // patch_length

    # Conv2d(kernel=(patch_length, V), stride=patch_length) on (N,1,Q,V) ==
    # per-patch linear projection.  Row-major flatten of each (patch_length, V)
    # window matches the Conv2d weight layout (out_ch, in_ch=1, kh, kw).
    patches = x[:, : n_patches * patch_length, :].reshape(
        N * n_patches, patch_length * V
    )
    w = conv_weight.reshape(E, patch_length * V).T      # (patch_length*V, E)
    y = pallas_linear(patches, w, conv_bias,
                      compute_dtype=compute_dtype, out_dtype=out_dtype)
    return y.reshape(N, n_patches, E)


# ----------------------------------------------------------------------------
# Example run
# ----------------------------------------------------------------------------
if __name__ == "__main__":
    out_shape = (8, 16)      # (query_len, vocab_size)
    patch_length = 1
    embed_dim = 256          # multiple of 128 -> lane-dense output, no pad/slice
    batch = 2

    key = jax.random.PRNGKey(0)
    kx, kw, kb = jax.random.split(key, 3)
    x = jax.random.normal(kx, (batch,) + out_shape, jnp.float32)
    conv_w = jax.random.normal(
        kw, (embed_dim, 1, patch_length, out_shape[1]), jnp.float32) * 0.02
    conv_b = jax.random.normal(kb, (embed_dim,), jnp.float32) * 0.02

    y = out_embed_forward(x, conv_w, conv_b, patch_length)
    y = jax.block_until_ready(y)

    n_patches = out_shape[0] // patch_length
    assert y.shape == (batch, n_patches, embed_dim)

    # pure-JAX reference: the conv is a per-patch linear projection
    ref = jnp.einsum(
        "npk,ek->npe",
        x.reshape(batch, n_patches, patch_length * out_shape[1]),
        conv_w.reshape(embed_dim, patch_length * out_shape[1]),
    ) + conv_b
    assert jnp.allclose(y, ref, atol=1e-5, rtol=1e-5)

    print("KERNEL_OK")
</pallas_src>

<mosaic_0001>
module attributes {stable_mosaic.version = 11 : i64} {
  func.func @_linear_bias_kernel_noacc(%arg0: i32, %arg1: i32, %arg2: memref<16x16xf32, #tpu.memory_space<vmem>>, %arg3: memref<16x256xf32, #tpu.memory_space<vmem>>, %arg4: memref<1x256xf32, #tpu.memory_space<vmem>>, %arg5: memref<16x256xf32, #tpu.memory_space<vmem>>) attributes {dimension_semantics = [#tpu.dimension_semantics<parallel>, #tpu.dimension_semantics<parallel>], iteration_bounds = array<i64: 1, 1>, scalar_prefetch = 0 : i64, scratch_operands = 0 : i64, tpu.core_type = #tpu.core_type<tc>, window_params = [{transform_indices = @transform_0, window_bounds = array<i64: 16, 16>}, {transform_indices = @transform_1, window_bounds = array<i64: 16, 256>}, {transform_indices = @transform_2, window_bounds = array<i64: 1, 256>}, {transform_indices = @transform_3, window_bounds = array<i64: 16, 256>}]} {
    %c0 = arith.constant 0 : index
    %c0_0 = arith.constant 0 : index
    %0 = vector.load %arg2[%c0, %c0_0] : memref<16x16xf32, #tpu.memory_space<vmem>>, vector<16x16xf32>
    %c0_1 = arith.constant 0 : index
    %c0_2 = arith.constant 0 : index
    %1 = vector.load %arg3[%c0_1, %c0_2] : memref<16x256xf32, #tpu.memory_space<vmem>>, vector<16x256xf32>
    %cst = arith.constant dense<0.000000e+00> : vector<16x256xf32>
    %2 = tpu.matmul %0, %1, %cst {dimension_numbers = #tpu.dot_dimension_numbers<[1], [0], [0], [1], [0, 0, 1, 1], [], []>} : vector<16x16xf32>, vector<16x256xf32>, vector<16x256xf32> -> vector<16x256xf32>
    %c0_3 = arith.constant 0 : index
    %c0_4 = arith.constant 0 : index
    %3 = vector.load %arg4[%c0_3, %c0_4] : memref<1x256xf32, #tpu.memory_space<vmem>>, vector<1x256xf32>
    %4 = vector.broadcast %3 : vector<1x256xf32> to vector<16x256xf32>
    %5 = arith.addf %2, %4 : vector<16x256xf32>
    %c0_5 = arith.constant 0 : index
    %c0_6 = arith.constant 0 : index
    %6 = vector.load %arg5[%c0_5, %c0_6] : memref<16x256xf32, #tpu.memory_space<vmem>>, vector<16x256xf32>
    tpu.vector_store %arg5[%c0_5, %c0_6], %5 {strides = array<i32>} : memref<16x256xf32, #tpu.memory_space<vmem>>, vector<16x256xf32>,
    return
  }
  func.func @transform_0(%arg0: i32, %arg1: i32) -> (i32, i32) {
    %c0_i32 = arith.constant 0 : i32
    %c0_i32_0 = arith.constant 0 : i32
    return %arg0, %c0_i32 : i32, i32
  }
  func.func @transform_1(%arg0: i32, %arg1: i32) -> (i32, i32) {
    %c0_i32 = arith.constant 0 : i32
    %c0_i32_0 = arith.constant 0 : i32
    return %c0_i32, %arg1 : i32, i32
  }
  func.func @transform_2(%arg0: i32, %arg1: i32) -> (i32, i32) {
    %c0_i32 = arith.constant 0 : i32
    %c0_i32_0 = arith.constant 0 : i32
    return %c0_i32, %arg1 : i32, i32
  }
  func.func @transform_3(%arg0: i32, %arg1: i32) -> (i32, i32) {
    %c0_i32 = arith.constant 0 : i32
    return %arg0, %arg1 : i32, i32
  }
}

</mosaic_0001>

<llo_original>
// kernel: tpu_custom_call.1
$region0: #{tpu_custom_call.1}
  #allocation0 [shape = 'u32[]', space=smem, size = 0x4, offset = 0x4, fixed_abs, tag = 'smem constant byte address 0x4 - core index']
  #allocation1 [shape = 'u32[144,128]{1,0:T(1,128)}', space=vmem, size = 0x12000, scoped, tag = 'internal scratch']
  %s0 = inlined_call_operand.hbm [shape: f32[16,16], index: 0, kind: input, shape index: {}]
  %s1 = inlined_call_operand.hbm [shape: f32[16,256], index: 1, kind: input, shape index: {}]
  %s2 = inlined_call_operand.vmem [shape: f32[1,256], index: 2, kind: input, shape index: {}]
  %s3 = inlined_call_operand.hbm [shape: f32[16,256], index: 3, kind: output, shape index: {}]
  %s4 = sld [smem:[#allocation0]]
  $region30: #{tpu_custom_call.1} parent=0
    _
  %s6 = ssub.s32 1, %s4
  %s7 = scalar_select 0, %s6, %s4
  $region1: #{tpu_custom_call.1} parent=0
    #allocation2 [shape = 'u8[8192]{0}', space=vmem, size = 0x2000, scoped, tag = 'input window, operand 0, single buffered']
    #allocation3 [shape = 's32[1]{0}', space=sflag, size = 0x4, scoped, tag = 'scoped memory for tpu_custom_call.1']
    #allocation4 [shape = 's32[1]{0}', space=sflag, size = 0x4, scoped, tag = 'scoped memory for tpu_custom_call.1']
    #allocation5 [shape = 'u8[16384]{0}', space=vmem, size = 0x4000, scoped, tag = 'input window, operand 1, single buffered']
    #allocation6 [shape = 's32[1]{0}', space=sflag, size = 0x4, scoped, tag = 'scoped memory for tpu_custom_call.1']
    #allocation7 [shape = 'u8[16384]{0}', space=vmem, size = 0x4000, scoped, tag = 'output window, operand 0, single buffered']
    %8 = vsyncpa [#allocation3], 0
    %9 = vsyncpa [#allocation6], 0
    %10 = vsyncpa [#allocation4], 0
    // Predicated region
    $region2: #{tpu_custom_call.1} parent=1 // pred_check
      _
    $region3: #{tpu_custom_call.1} parent=1 // pred_check_branch
      %12 = sbr.rel (0) target = $region5
    $region4: #{tpu_custom_call.1} parent=1 // pred_region
      %s14 = ssub.s32 256, 256
      %15 = vsyncadd [#allocation3], %s14
      %s16 = sshll.u32 [#allocation2], 4
      %s17 = int_to_ptr.vmem [resolvable:$true] %s16
      %22 = dma.hbm_to_vmem [thread:$0]  %s0, 256, %s17, [#allocation3], 128, 128, 8
    $region5: #{tpu_custom_call.1} parent=1 // pred_fallthru
      _
    // Predicated region
    $region6: #{tpu_custom_call.1} parent=1 // pred_check
      _
    $region7: #{tpu_custom_call.1} parent=1 // pred_check_branch
      %24 = sbr.rel (0) target = $region9
    $region8: #{tpu_custom_call.1} parent=1 // pred_region
      %s26 = ssub.s32 512, 512
      %27 = vsyncadd [#allocation6], %s26
      %s28 = sshll.u32 [#allocation5], 4
      %s29 = int_to_ptr.vmem [resolvable:$true] %s28
      %34 = dma.hbm_to_vmem [thread:$0]  %s1, 512, %s29, [#allocation6], 256, 256, 16
    $region9: #{tpu_custom_call.1} parent=1 // pred_fallthru
      _
    // Predicated region
    $region10: #{tpu_custom_call.1} parent=1 // pred_check
      _
    $region11: #{tpu_custom_call.1} parent=1 // pred_check_branch
      %36 = sbr.rel (0) target = $region13
    $region12: #{tpu_custom_call.1} parent=1 // pred_region
      _
    $region13: #{tpu_custom_call.1} parent=1 // pred_fallthru
      _
    // Predicated region
    $region14: #{tpu_custom_call.1} parent=1 // pred_check
      _
    $region15: #{tpu_custom_call.1} parent=1 // pred_check_branch
      %38 = sbr.rel (0) target = $region17
    $region16: #{tpu_custom_call.1} parent=1 // pred_region
      %39 = dma.done [#allocation3], 256
    $region17: #{tpu_custom_call.1} parent=1 // pred_fallthru
      _
    // Predicated region
    $region18: #{tpu_custom_call.1} parent=1 // pred_check
      _
    $region19: #{tpu_custom_call.1} parent=1 // pred_check_branch
      %41 = sbr.rel (0) target = $region21
    $region20: #{tpu_custom_call.1} parent=1 // pred_region
      %42 = dma.done [#allocation6], 512
    $region21: #{tpu_custom_call.1} parent=1 // pred_fallthru
      _
    %v43 = vld [vmem:[#allocation2] sm:$0xff]
    %v44 = vld [vmem:[#allocation2 + $0x8] sm:$0xff]
    %v45 = vld [vmem:[#allocation5] sm:$0xff]
    %v46 = vld [vmem:[#allocation5 + $0x8] sm:$0xff]
    %v47 = vld [vmem:[#allocation5 + $0x10] sm:$0xff]
    %v48 = vld [vmem:[#allocation5 + $0x18] sm:$0xff]
    %v49 = vld [vmem:[%s2] sm:$0x3]
    %v51 = vlaneseq
    %v52 = vshrl.u32 %v51, 7
    %v53 = vsub.s32 0, %v52
    %v54 = vrot.slane %v49, %v53
    %v55 = vlaneseq
    %v56 = vshrl.u32 %v55, 7
    %v57 = vsub.s32 1, %v56
    %v58 = vrot.slane %v49, %v57
    %vm61 = vcmask 130048
    %v63 = vsel %vm61, %v43, 0
    %v66 = vsel %vm61, %v44, 0
    %68 = vmatprep.subr.mxu0 %v46
    %69 = vmatpush1.msra.mxu0 %v45
    %70 = vmatprep.subr.mxu0 %v48
    %71 = vmatpush1.msra.mxu0 %v47
    %72 = vmatprep.subr.mxu0 0.0
    %73 = vmatpush1.msra.mxu0 0.0
    %74 = vmatprep.subr.mxu0 0.0
    %75 = vmatpush1.msra.mxu0 0.0
    %76 = vmatprep.subr.mxu0 0.0
    %77 = vmatpush1.msra.mxu0 0.0
    %78 = vmatprep.subr.mxu0 0.0
    %79 = vmatpush1.msra.mxu0 0.0
    %80 = vmatprep.subr.mxu0 0.0
    %81 = vmatpush1.msra.mxu0 0.0
    %82 = vmatprep.subr.mxu0 0.0
    %83 = vmatpush1.msra.mxu0 0.0
    %84 = vmatprep.subr.mxu0 0.0
    %85 = vmatpush1.msra.mxu0 0.0
    %86 = vmatprep.subr.mxu0 0.0
    %87 = vmatpush1.msra.mxu0 0.0
    %88 = vmatprep.subr.mxu0 0.0
    %89 = vmatpush1.msra.mxu0 0.0
    %90 = vmatprep.subr.mxu0 0.0
    %91 = vmatpush1.msra.mxu0 0.0
    %92 = vmatprep.subr.mxu0 0.0
    %93 = vmatpush1.msra.mxu0 0.0
    %94 = vmatprep.subr.mxu0 0.0
    %95 = vmatpush1.msra.mxu0 0.0
    %96 = vmatprep.subr.mxu0 0.0
    %97 = vmatpush1.msra.mxu0 0.0
    %98 = vmatprep.subr.mxu0 0.0
    %99 = vmatpush1.msra.mxu0 0.0
    %100 = vmatprep.subr.mxu0 0.0
    %101 = vmatpush1.msra.mxu0 0.0
    %102 = vmatprep.subr.mxu0 0.0
    %103 = vmatpush1.msra.mxu0 0.0
    %104 = vmatprep.subr.mxu0 0.0
    %105 = vmatpush1.msra.mxu0 0.0
    %106 = vmatprep.subr.mxu0 0.0
    %107 = vmatpush1.msra.mxu0 0.0
    %108 = vmatprep.subr.mxu0 0.0
    %109 = vmatpush1.msra.mxu0 0.0
    %110 = vmatprep.subr.mxu0 0.0
    %111 = vmatpush1.msra.mxu0 0.0
    %112 = vmatprep.subr.mxu0 0.0
    %113 = vmatpush1.msra.mxu0 0.0
    %114 = vmatprep.subr.mxu0 0.0
    %115 = vmatpush1.msra.mxu0 0.0
    %116 = vmatprep.subr.mxu0 0.0
    %117 = vmatpush1.msra.mxu0 0.0
    %118 = vmatprep.subr.mxu0 0.0
    %119 = vmatpush1.msra.mxu0 0.0
    %120 = vmatprep.subr.mxu0 0.0
    %121 = vmatpush1.msra.mxu0 0.0
    %122 = vmatprep.subr.mxu0 0.0
    %123 = vmatpush1.msra.mxu0 0.0
    %124 = vmatprep.subr.mxu0 0.0
    %125 = vmatpush1.msra.mxu0 0.0
    %126 = vmatprep.subr.mxu0 0.0
    %127 = vmatpush1.msra.mxu0 0.0
    %128 = vmatprep.subr.mxu0 0.0
    %129 = vmatpush1.msra.mxu0 0.0
    %130 = vmatprep.subr.mxu0 0.0
    %131 = vmatpush1.msra.mxu0 0.0
    %132 = vmatprep.mubr.f32.mxu0 0.0
    %133 = vmatmul.mubr.f32.gmra.mrb[0].mxu0 %v63
    %v134 = vpop.f32.mrb[0].mxu0
    %v135 = vadd.f32 %v54, %v134
    %v136 = vpop.f32.mrb[0].mxu0
    %v137 = vadd.f32 %v58, %v136
    %138 = vmatprep.mubr.f32.mxu0 0.0
    %139 = vmatmul.mubr.f32.gmra.mrb[0].mxu0 %v66
    %v140 = vpop.f32.mrb[0].mxu0
    %v141 = vadd.f32 %v54, %v140
    %v142 = vpop.f32.mrb[0].mxu0
    %v143 = vadd.f32 %v58, %v142
    %144 = vdwg.mxu0
    %145 = vst [vmem:[#allocation7] sm:$0xff] %v135
    %146 = vst [vmem:[#allocation7 + $0x8] sm:$0xff] %v137
    %147 = vst [vmem:[#allocation7 + $0x10] sm:$0xff] %v141
    %148 = vst [vmem:[#allocation7 + $0x18] sm:$0xff] %v143
    // Predicated region
    $region22: #{tpu_custom_call.1} parent=1 // pred_check
      _
    $region23: #{tpu_custom_call.1} parent=1 // pred_check_branch
      %150 = sbr.rel (0) target = $region25
    $region24: #{tpu_custom_call.1} parent=1 // pred_region
      %s152 = ssub.s32 512, 512
      %153 = vsyncadd [#allocation4], %s152
      %s154 = sshll.u32 [#allocation7], 4
      %s155 = int_to_ptr.vmem [resolvable:$true] %s154
      %160 = dma.vmem_to_hbm [thread:$0]  %s155, 512, %s3, [#allocation4], 256, 256, 16
    $region25: #{tpu_custom_call.1} parent=1 // pred_fallthru
      _
    // Predicated region
    $region26: #{tpu_custom_call.1} parent=1 // pred_check
      _
    $region27: #{tpu_custom_call.1} parent=1 // pred_check_branch
      %162 = sbr.rel (0) target = $region29
    $region28: #{tpu_custom_call.1} parent=1 // pred_region
      %163 = dma.done [#allocation4], 512
    $region29: #{tpu_custom_call.1} parent=1 // pred_fallthru
      _
    %164 = vsyncpa [#allocation3], 1
    %165 = vsyncpa [#allocation6], 1
    %166 = vsyncpa [#allocation4], 1

</llo_original>
